<compile_context>
chip_gen: v7x
topology: tpu7x:2x2x1
jax: 0.10.0
libtpu: 0.0.40
codegen_flags: <defaults>
</compile_context>

<pallas_src>
import functools

import numpy as np
import jax
import jax.numpy as jnp
from jax import lax
from jax.experimental import pallas as pl
from jax.experimental.pallas import tpu as pltpu

UNIT_COUNT = 100           # as in the reference script
PADDING_VALUE = 43         # `padding_value` is not defined in the snippet; fixed here
V = UNIT_COUNT + 1         # embedding rows (input_dim)  = 101
D = PADDING_VALUE + 1      # embedding cols (output_dim) = 44

LANES = 128                # TPU lane width


def _linear_model_kernel(batch, seq_len, d_valid, pad_value,
                         x_ref, w_ref, probs_ref, packed_ref):
    """Single fused invocation over all B*T positions.

    x_ref:      (Np, 1)    int32   flattened token ids (one per sublane)
    w_ref:      (Vp, Dp)   float32 embedding weight zero-padded to 128x128
    probs_ref:  (Np, Dp)   float32 embedding rows (lane-dense, sliced outside)
    packed_ref: (8, 128)   int32   row 0 labels, row 1 labels_ded, row 2 labels_ded_inv
    """
    Np = x_ref.shape[0]
    Vp, Dp = w_ref.shape
    L = packed_ref.shape[1]
    N = batch * seq_len

    x_col = x_ref[...]                                               # (Np, 1)

    # ---- embedding gather as one-hot matmul on the MXU (exact f32) ----
    v_iota = lax.broadcasted_iota(jnp.int32, (Np, Vp), 1)
    onehot = (x_col == v_iota).astype(jnp.float32)                   # (Np, Vp)
    probs = jnp.dot(onehot, w_ref[...],
                    preferred_element_type=jnp.float32,
                    precision=jax.lax.Precision.HIGHEST)             # (Np, Dp)
    probs_ref[...] = probs

    # ---- argmax over valid d < d_valid (first-index tie semantics) ----
    d_iota = lax.broadcasted_iota(jnp.int32, (Np, Dp), 1)
    valid_d = d_iota < d_valid
    maxv = jnp.max(jnp.where(valid_d, probs, -jnp.inf), axis=1, keepdims=True)
    labels_col = jnp.min(jnp.where((probs == maxv) & valid_d, d_iota, Dp),
                         axis=1, keepdims=True)                      # (Np, 1) i32

    # ---- in-kernel bookkeeping (no extra input DMAs) ----
    sub_iota = lax.broadcasted_iota(jnp.int32, (Np, 1), 0)   # flat pos per sublane
    lane_iota = lax.broadcasted_iota(jnp.int32, (1, L), 1)   # flat pos per lane
    if (seq_len & (seq_len - 1)) == 0:                       # power-of-two T: shift/mask
        shift = seq_len.bit_length() - 1
        src_row = sub_iota >> shift
        dst_row = lane_iota >> shift
        dst_t = lane_iota & (seq_len - 1)
    else:
        src_row = sub_iota // seq_len
        dst_row = lane_iota // seq_len
        dst_t = lane_iota - dst_row * seq_len
    row_id_col = jnp.where(sub_iota < N, src_row, -1)        # (Np, 1) src batch row
    dest_row = jnp.where(lane_iota < N, dst_row, -1)         # (1, L)  dst batch row
    dest_t = jnp.where(lane_iota < N, dst_t, -1)             # (1, L)  dst within-row pos

    n_sub = lax.broadcasted_iota(jnp.int32, (Np, L), 0)
    m_lane = lax.broadcasted_iota(jnp.int32, (Np, L), 1)
    eye = n_sub == m_lane

    # transpose labels to lane-dense row layout: labels_row[m] = labels[m]
    labels_row = jnp.max(jnp.where(eye, labels_col, -1), axis=0, keepdims=True)
    # previous flat position's label via XLU lane rotate (lane-0 wrap is masked
    # by dest_t > 0 below)
    prev_row = pltpu.roll(labels_row, shift=1, axis=1)

    # ---- torch.unique_consecutive(labels[b], return_inverse=True) per row ----
    # run boundaries, reset at every batch-row start (dest_t == 0); padded
    # lanes have dest_t == -1 and are excluded here and by same_row below.
    change_row = jnp.where((dest_t > 0) & (labels_row != prev_row), 1, 0)  # (1, L)

    # per-batch-row prefix sum of boundaries -> inverse run indices
    same_row = row_id_col == dest_row                                  # (Np, L)
    tri = same_row & (m_lane <= n_sub)
    inv_col = jnp.sum(jnp.where(tri, change_row, 0), axis=1, keepdims=True)  # (Np, 1)
    inv_row = jnp.max(jnp.where(eye, inv_col, -1), axis=0, keepdims=True)    # (1, L)

    # scatter run values to compacted positions inside each batch row;
    # val_row < 0  <=>  no run maps to this slot  ->  pad_value
    member = same_row & (inv_col == dest_t)                            # (Np, L)
    val_row = jnp.max(jnp.where(member, labels_col, -1), axis=0, keepdims=True)
    ded_row = jnp.where(val_row >= 0, val_row, pad_value)

    # ---- pack the three int outputs into one lane-dense (8, 128) tile ----
    k_sub = lax.broadcasted_iota(jnp.int32, (8, L), 0)
    packed_ref[...] = jnp.where(k_sub == 0, labels_row,
                                jnp.where(k_sub == 1, ded_row,
                                          jnp.where(k_sub == 2, inv_row, 0)))


def pad_embedding_weight(emb_weight):
    """One-time (init-time) zero-padding of the embedding to a clean 128x128 tile."""
    Vw, Dw = emb_weight.shape
    Vp = ((Vw + LANES - 1) // LANES) * LANES
    Dp = ((Dw + LANES - 1) // LANES) * LANES
    return jnp.zeros((Vp, Dp), jnp.float32).at[:Vw, :Dw].set(
        emb_weight.astype(jnp.float32))


@jax.jit
def linear_model_forward(x, w_pad):
    B, T = x.shape
    N = B * T
    assert N <= LANES, "fused kernel packs all B*T positions onto 128 lanes"
    # TODO(synk): for B*T > 128, split into per-batch-row-block grid steps
    # marked "parallel" (feeds both v7x TensorCores); not needed at toy sizes.

    N_pad = ((N + 7) // 8) * 8
    Vp, Dp = w_pad.shape

    x_col = jnp.zeros((N_pad, 1), jnp.int32).at[:N, 0].set(
        x.reshape(N).astype(jnp.int32))

    grid_spec = pltpu.PrefetchScalarGridSpec(
        num_scalar_prefetch=0,
        grid=(1,),
        in_specs=[
            pl.BlockSpec((N_pad, 1), lambda i: (0, 0)),      # token ids
            pl.BlockSpec((Vp, Dp), lambda i: (0, 0)),        # pre-padded weight
        ],
        out_specs=[
            pl.BlockSpec((N_pad, Dp), lambda i: (0, 0)),     # padded probs
            pl.BlockSpec((8, LANES), lambda i: (0, 0)),      # packed int outputs
        ],
    )

    probs_pad, packed = pl.pallas_call(
        functools.partial(_linear_model_kernel, B, T, D, PADDING_VALUE),
        out_shape=(
            jax.ShapeDtypeStruct((N_pad, Dp), jnp.float32),
            jax.ShapeDtypeStruct((8, LANES), jnp.int32),
        ),
        grid_spec=grid_spec,
        compiler_params=pltpu.CompilerParams(
            dimension_semantics=("arbitrary",)),
    )(x_col, w_pad)

    probs = probs_pad[:N, :D].reshape(B, T, D)
    labels = packed[0, :N].reshape(B, T)
    labels_ded = packed[1, :N].reshape(B, T)
    labels_ded_inv = packed[2, :N].reshape(B, T)
    return probs, labels, labels_ded, labels_ded_inv


if __name__ == "__main__":
    key = jax.random.PRNGKey(0)
    k_w, k_x = jax.random.split(key)

    # get_superv_mapping(): rows are Dirichlet samples (sum to 1, L2 norm <= 1),
    # so nn.Embedding(max_norm=1) renormalization is a no-op.
    emb_weight = jax.random.dirichlet(k_w, jnp.ones((D,), jnp.float32), shape=(V,))

    # Padding hoisted out of the per-call path (done once at "init").
    w_pad = pad_embedding_weight(emb_weight)

    B, T = 2, 8
    # small id range so consecutive repeats occur and exercise the dedup path
    x = jax.random.randint(k_x, (B, T), 0, 6, dtype=jnp.int32)

    probs, labels, labels_ded, labels_ded_inv = jax.block_until_ready(
        linear_model_forward(x, w_pad)
    )

    # ---- pure NumPy reference ----
    probs_ref = np.asarray(emb_weight)[np.asarray(x)]
    assert np.allclose(np.asarray(probs), probs_ref, rtol=1e-5, atol=1e-6)

    labels_np = np.argmax(np.asarray(probs), axis=-1).astype(np.int32)
    ded_np = np.full((B, T), PADDING_VALUE, np.int32)
    inv_np = np.zeros((B, T), np.int32)
    for b in range(B):
        uniq = []
        for t in range(T):
            if t == 0 or labels_np[b, t] != labels_np[b, t - 1]:
                uniq.append(labels_np[b, t])
            inv_np[b, t] = len(uniq) - 1
        ded_np[b, : len(uniq)] = uniq

    assert np.array_equal(np.asarray(labels), labels_np)
    assert np.array_equal(np.asarray(labels_ded), ded_np)
    assert np.array_equal(np.asarray(labels_ded_inv), inv_np)

    print("KERNEL_OK")
</pallas_src>

<mosaic_0001>
module attributes {stable_mosaic.version = 11 : i64} {
  func.func @_linear_model_kernel(%arg0: i32, %arg1: memref<16x1xi32, #tpu.memory_space<vmem>>, %arg2: memref<128x128xf32, #tpu.memory_space<vmem>>, %arg3: memref<16x128xf32, #tpu.memory_space<vmem>>, %arg4: memref<8x128xi32, #tpu.memory_space<vmem>>) attributes {dimension_semantics = [#tpu.dimension_semantics<arbitrary>], iteration_bounds = array<i64: 1>, scalar_prefetch = 0 : i64, scratch_operands = 0 : i64, tpu.core_type = #tpu.core_type<tc>, window_params = [{pipeline_mode = #tpu.pipeline_mode<synchronous>, transform_indices = @transform_0, window_bounds = array<i64: 16, 1>}, {pipeline_mode = #tpu.pipeline_mode<synchronous>, transform_indices = @transform_1, window_bounds = array<i64: 128, 128>}, {pipeline_mode = #tpu.pipeline_mode<synchronous>, transform_indices = @transform_2, window_bounds = array<i64: 16, 128>}, {pipeline_mode = #tpu.pipeline_mode<synchronous>, transform_indices = @transform_3, window_bounds = array<i64: 8, 128>}]} {
    %c0 = arith.constant 0 : index
    %c0_0 = arith.constant 0 : index
    %0 = vector.load %arg1[%c0, %c0_0] : memref<16x1xi32, #tpu.memory_space<vmem>>, vector<16x1xi32>
    %1 = tpu.iota {dimensions = array<i32: 1>} : vector<16x128xi32>
    %2 = vector.broadcast %0 : vector<16x1xi32> to vector<16x128xi32>
    %3 = arith.cmpi eq, %2, %1 : vector<16x128xi32>
    %4 = arith.extui %3 : vector<16x128xi1> to vector<16x128xi32>
    %5 = arith.sitofp %4 : vector<16x128xi32> to vector<16x128xf32>
    %c0_1 = arith.constant 0 : index
    %c0_2 = arith.constant 0 : index
    %6 = vector.load %arg2[%c0_1, %c0_2] : memref<128x128xf32, #tpu.memory_space<vmem>>, vector<128x128xf32>
    %cst = arith.constant dense<0.000000e+00> : vector<16x128xf32>
    %7 = tpu.matmul %5, %6, %cst {dimension_numbers = #tpu.dot_dimension_numbers<[1], [0], [0], [1], [0, 0, 1, 1], [], []>, precision = #tpu.contract_precision<fp32>} : vector<16x128xf32>, vector<128x128xf32>, vector<16x128xf32> -> vector<16x128xf32>
    %c0_3 = arith.constant 0 : index
    %c0_4 = arith.constant 0 : index
    %8 = vector.load %arg3[%c0_3, %c0_4] : memref<16x128xf32, #tpu.memory_space<vmem>>, vector<16x128xf32>
    tpu.vector_store %arg3[%c0_3, %c0_4], %7 {strides = array<i32>} : memref<16x128xf32, #tpu.memory_space<vmem>>, vector<16x128xf32>,
    %9 = tpu.iota {dimensions = array<i32: 1>} : vector<16x128xi32>
    %c44_i32 = arith.constant 44 : i32
    %10 = vector.broadcast %c44_i32 : i32 to vector<16x128xi32>
    %11 = arith.cmpi slt, %9, %10 : vector<16x128xi32>
    %cst_5 = arith.constant 0xFF800000 : f32
    %12 = vector.broadcast %cst_5 : f32 to vector<16x128xf32>
    %13 = arith.select %11, %7, %12 : vector<16x128xi1>, vector<16x128xf32>
    %cst_6 = arith.constant dense<0xFF800000> : vector<16xf32>
    %14 = vector.multi_reduction <maximumf>, %13, %cst_6 [1] : vector<16x128xf32> to vector<16xf32>
    %15 = vector.shape_cast %14 : vector<16xf32> to vector<16x1xf32>
    %16 = vector.broadcast %15 : vector<16x1xf32> to vector<16x128xf32>
    %17 = arith.cmpf oeq, %7, %16 : vector<16x128xf32>
    %18 = arith.andi %17, %11 : vector<16x128xi1>
    %c128_i32 = arith.constant 128 : i32
    %19 = vector.broadcast %c128_i32 : i32 to vector<16x128xi32>
    %20 = arith.select %18, %9, %19 : vector<16x128xi1>, vector<16x128xi32>
    %cst_7 = arith.constant dense<2147483647> : vector<16xi32>
    %21 = vector.multi_reduction <minsi>, %20, %cst_7 [1] : vector<16x128xi32> to vector<16xi32>
    %22 = vector.shape_cast %21 : vector<16xi32> to vector<16x1xi32>
    %23 = tpu.iota {dimensions = array<i32: 0>} : vector<16x1xi32>
    %24 = tpu.iota {dimensions = array<i32: 1>} : vector<1x128xi32>
    %c3_i32 = arith.constant 3 : i32
    %25 = vector.broadcast %c3_i32 : i32 to vector<16x1xi32>
    %26 = arith.shrsi %23, %25 : vector<16x1xi32>
    %c3_i32_8 = arith.constant 3 : i32
    %27 = vector.broadcast %c3_i32_8 : i32 to vector<1x128xi32>
    %28 = arith.shrsi %24, %27 : vector<1x128xi32>
    %c7_i32 = arith.constant 7 : i32
    %29 = vector.broadcast %c7_i32 : i32 to vector<1x128xi32>
    %30 = arith.andi %24, %29 : vector<1x128xi32>
    %c16_i32 = arith.constant 16 : i32
    %31 = vector.broadcast %c16_i32 : i32 to vector<16x1xi32>
    %32 = arith.cmpi slt, %23, %31 : vector<16x1xi32>
    %c-1_i32 = arith.constant -1 : i32
    %33 = vector.broadcast %c-1_i32 : i32 to vector<16x1xi32>
    %34 = arith.select %32, %26, %33 : vector<16x1xi1>, vector<16x1xi32>
    %c16_i32_9 = arith.constant 16 : i32
    %35 = vector.broadcast %c16_i32_9 : i32 to vector<1x128xi32>
    %36 = arith.cmpi slt, %24, %35 : vector<1x128xi32>
    %c-1_i32_10 = arith.constant -1 : i32
    %37 = vector.broadcast %c-1_i32_10 : i32 to vector<1x128xi32>
    %38 = arith.select %36, %28, %37 : vector<1x128xi1>, vector<1x128xi32>
    %c16_i32_11 = arith.constant 16 : i32
    %39 = vector.broadcast %c16_i32_11 : i32 to vector<1x128xi32>
    %40 = arith.cmpi slt, %24, %39 : vector<1x128xi32>
    %c-1_i32_12 = arith.constant -1 : i32
    %41 = vector.broadcast %c-1_i32_12 : i32 to vector<1x128xi32>
    %42 = arith.select %40, %30, %41 : vector<1x128xi1>, vector<1x128xi32>
    %43 = tpu.iota {dimensions = array<i32: 0>} : vector<16x128xi32>
    %44 = tpu.iota {dimensions = array<i32: 1>} : vector<16x128xi32>
    %45 = arith.cmpi eq, %43, %44 : vector<16x128xi32>
    %c-1_i32_13 = arith.constant -1 : i32
    %46 = vector.shape_cast %22 : vector<16x1xi32> to vector<16x1xi32>
    %47 = vector.broadcast %46 : vector<16x1xi32> to vector<16x128xi32>
    %48 = vector.broadcast %c-1_i32_13 : i32 to vector<16x128xi32>
    %49 = arith.select %45, %47, %48 : vector<16x128xi1>, vector<16x128xi32>
    %cst_14 = arith.constant dense<-2147483648> : vector<128xi32>
    %50 = vector.multi_reduction <maxsi>, %49, %cst_14 [0] : vector<16x128xi32> to vector<128xi32>
    %51 = vector.shape_cast %50 : vector<128xi32> to vector<1x128xi32>
    %c1_i32 = arith.constant 1 : i32
    %52 = tpu.dynamic_rotate %51 by %c1_i32 dim 1 : vector<1x128xi32>, i32 -> vector<1x128xi32>
    %c0_i32 = arith.constant 0 : i32
    %53 = vector.broadcast %c0_i32 : i32 to vector<1x128xi32>
    %54 = arith.cmpi sgt, %42, %53 : vector<1x128xi32>
    %55 = arith.cmpi ne, %51, %52 : vector<1x128xi32>
    %56 = arith.andi %54, %55 : vector<1x128xi1>
    %c1_i32_15 = arith.constant 1 : i32
    %c0_i32_16 = arith.constant 0 : i32
    %57 = vector.broadcast %c1_i32_15 : i32 to vector<1x128xi32>
    %58 = vector.broadcast %c0_i32_16 : i32 to vector<1x128xi32>
    %59 = arith.select %56, %57, %58 : vector<1x128xi1>, vector<1x128xi32>
    %60 = vector.broadcast %34 : vector<16x1xi32> to vector<16x128xi32>
    %61 = vector.broadcast %38 : vector<1x128xi32> to vector<16x128xi32>
    %62 = arith.cmpi eq, %60, %61 : vector<16x128xi32>
    %63 = arith.cmpi sle, %44, %43 : vector<16x128xi32>
    %64 = arith.andi %62, %63 : vector<16x128xi1>
    %c0_i32_17 = arith.constant 0 : i32
    %65 = vector.shape_cast %59 : vector<1x128xi32> to vector<1x128xi32>
    %66 = vector.broadcast %65 : vector<1x128xi32> to vector<16x128xi32>
    %67 = vector.broadcast %c0_i32_17 : i32 to vector<16x128xi32>
    %68 = arith.select %64, %66, %67 : vector<16x128xi1>, vector<16x128xi32>
    %cst_18 = arith.constant dense<0> : vector<16xi32>
    %69 = vector.multi_reduction <add>, %68, %cst_18 [1] : vector<16x128xi32> to vector<16xi32>
    %70 = vector.shape_cast %69 : vector<16xi32> to vector<16x1xi32>
    %c-1_i32_19 = arith.constant -1 : i32
    %71 = vector.shape_cast %70 : vector<16x1xi32> to vector<16x1xi32>
    %72 = vector.broadcast %71 : vector<16x1xi32> to vector<16x128xi32>
    %73 = vector.broadcast %c-1_i32_19 : i32 to vector<16x128xi32>
    %74 = arith.select %45, %72, %73 : vector<16x128xi1>, vector<16x128xi32>
    %cst_20 = arith.constant dense<-2147483648> : vector<128xi32>
    %75 = vector.multi_reduction <maxsi>, %74, %cst_20 [0] : vector<16x128xi32> to vector<128xi32>
    %76 = vector.shape_cast %75 : vector<128xi32> to vector<1x128xi32>
    %77 = vector.broadcast %70 : vector<16x1xi32> to vector<16x128xi32>
    %78 = vector.broadcast %42 : vector<1x128xi32> to vector<16x128xi32>
    %79 = arith.cmpi eq, %77, %78 : vector<16x128xi32>
    %80 = arith.andi %62, %79 : vector<16x128xi1>
    %c-1_i32_21 = arith.constant -1 : i32
    %81 = vector.shape_cast %22 : vector<16x1xi32> to vector<16x1xi32>
    %82 = vector.broadcast %81 : vector<16x1xi32> to vector<16x128xi32>
    %83 = vector.broadcast %c-1_i32_21 : i32 to vector<16x128xi32>
    %84 = arith.select %80, %82, %83 : vector<16x128xi1>, vector<16x128xi32>
    %cst_22 = arith.constant dense<-2147483648> : vector<128xi32>
    %85 = vector.multi_reduction <maxsi>, %84, %cst_22 [0] : vector<16x128xi32> to vector<128xi32>
    %86 = vector.shape_cast %85 : vector<128xi32> to vector<1x128xi32>
    %c0_i32_23 = arith.constant 0 : i32
    %87 = vector.broadcast %c0_i32_23 : i32 to vector<1x128xi32>
    %88 = arith.cmpi sge, %86, %87 : vector<1x128xi32>
    %c43_i32 = arith.constant 43 : i32
    %89 = vector.broadcast %c43_i32 : i32 to vector<1x128xi32>
    %90 = arith.select %88, %86, %89 : vector<1x128xi1>, vector<1x128xi32>
    %91 = tpu.iota {dimensions = array<i32: 0>} : vector<8x128xi32>
    %c0_i32_24 = arith.constant 0 : i32
    %92 = vector.broadcast %c0_i32_24 : i32 to vector<8x128xi32>
    %93 = arith.cmpi eq, %91, %92 : vector<8x128xi32>
    %c1_i32_25 = arith.constant 1 : i32
    %94 = vector.broadcast %c1_i32_25 : i32 to vector<8x128xi32>
    %95 = arith.cmpi eq, %91, %94 : vector<8x128xi32>
    %c2_i32 = arith.constant 2 : i32
    %96 = vector.broadcast %c2_i32 : i32 to vector<8x128xi32>
    %97 = arith.cmpi eq, %91, %96 : vector<8x128xi32>
    %c0_i32_26 = arith.constant 0 : i32
    %98 = vector.shape_cast %76 : vector<1x128xi32> to vector<1x128xi32>
    %99 = vector.broadcast %98 : vector<1x128xi32> to vector<8x128xi32>
    %100 = vector.broadcast %c0_i32_26 : i32 to vector<8x128xi32>
    %101 = arith.select %97, %99, %100 : vector<8x128xi1>, vector<8x128xi32>
    %102 = vector.shape_cast %90 : vector<1x128xi32> to vector<1x128xi32>
    %103 = vector.broadcast %102 : vector<1x128xi32> to vector<8x128xi32>
    %104 = arith.select %95, %103, %101 : vector<8x128xi1>, vector<8x128xi32>
    %105 = vector.shape_cast %51 : vector<1x128xi32> to vector<1x128xi32>
    %106 = vector.broadcast %105 : vector<1x128xi32> to vector<8x128xi32>
    %107 = arith.select %93, %106, %104 : vector<8x128xi1>, vector<8x128xi32>
    %c0_27 = arith.constant 0 : index
    %c0_28 = arith.constant 0 : index
    %108 = vector.load %arg4[%c0_27, %c0_28] : memref<8x128xi32, #tpu.memory_space<vmem>>, vector<8x128xi32>
    tpu.vector_store %arg4[%c0_27, %c0_28], %107 {strides = array<i32>} : memref<8x128xi32, #tpu.memory_space<vmem>>, vector<8x128xi32>,
    return
  }
  func.func @transform_0(%arg0: i32) -> (i32, i32) {
    %c0_i32 = arith.constant 0 : i32
    %c0_i32_0 = arith.constant 0 : i32
    %c0_i32_1 = arith.constant 0 : i32
    return %c0_i32, %c0_i32_0 : i32, i32
  }
  func.func @transform_1(%arg0: i32) -> (i32, i32) {
    %c0_i32 = arith.constant 0 : i32
    %c0_i32_0 = arith.constant 0 : i32
    %c0_i32_1 = arith.constant 0 : i32
    return %c0_i32, %c0_i32_0 : i32, i32
  }
  func.func @transform_2(%arg0: i32) -> (i32, i32) {
    %c0_i32 = arith.constant 0 : i32
    %c0_i32_0 = arith.constant 0 : i32
    %c0_i32_1 = arith.constant 0 : i32
    return %c0_i32, %c0_i32_0 : i32, i32
  }
  func.func @transform_3(%arg0: i32) -> (i32, i32) {
    %c0_i32 = arith.constant 0 : i32
    %c0_i32_0 = arith.constant 0 : i32
    %c0_i32_1 = arith.constant 0 : i32
    return %c0_i32, %c0_i32_0 : i32, i32
  }
}

</mosaic_0001>

<llo_original>
// kernel: squeeze.5
$region0: #{squeeze.5}
  %s0 = inlined_call_operand.vmem [shape: s32[16], index: 0, kind: input, shape index: {}]
  %s1 = inlined_call_operand.hbm [shape: s32[2,8], index: 1, kind: output, shape index: {}]
  $region1: #{squeeze.5} parent=0
    #allocation0 [shape = 'u8[1024]{0}', space=vmem, size = 0x400, scoped, tag = 'operand span for operand 1']
    #allocation1 [shape = 's32[1]{0}', space=sflag, size = 0x4, scoped, tag = 'scoped memory for squeeze.5']
    #allocation2 [shape = 'u8[4096]{0}', space=vmem, size = 0x1000, scoped, tag = 'scoped mem for output reshape']
    #allocation3 [shape = 'u8[4096]{0}', space=vmem, size = 0x1000, scoped, tag = 'scoped mem for input reshape']
    %2 = vsyncpa [#allocation1], 0
    %s4 = sshllo.u32 0, 1
    %v5 = vld [vmem:[%s0] sm:%s4]
    %6 = vst [vmem:[#allocation3] sm:%s4] %v5
    %v7 = vld [vmem:[#allocation3] sm:$0x1]
    %vm8 = vcmask 64512
    %9 = vst.msk [vmem:[#allocation2] sm:$0x1] %vm8, %v7
    %v10 = vld [vmem:[#allocation3] sm:$0x1]
    %11 = vrot.lane.b32.xlu0 %v10, 120
    %v12 = vpop.permute.xlu0 %11
    %vm13 = vcmask 64512
    %s14 = scalar_lea.vmem [#allocation2], 1
    %15 = vst.msk [vmem:[%s14] sm:$0x1] %vm13, %v12
    %s17 = sshllo.u32 0, 2
    %v19 = vld [vmem:[#allocation2] sm:%s17]
    %s20 = sshllo.u32 0, 2
    %21 = vst [vmem:[#allocation0] sm:%s20] %v19
    %s23 = ssub.s32 32, 32
    %24 = vsyncadd [#allocation1], %s23
    %s26 = sshll.u32 [#allocation0], 4
    %s27 = int_to_ptr.vmem [resolvable:$true] %s26
    %29 = dma.vmem_to_hbm [thread:$0]  %s27, 32, %s1, [#allocation1]
    %30 = dma.done [#allocation1], 32
    %31 = vsyncpa [#allocation1], 1

// kernel: linear_model_forward.1
$region0: #{linear_model_forward.1}
  #allocation0 [shape = 'u32[]', space=smem, size = 0x4, offset = 0x4, fixed_abs, tag = 'smem constant byte address 0x4 - core index']
  #allocation1 [shape = 'u32[144,128]{1,0:T(1,128)}', space=vmem, size = 0x12000, scoped, tag = 'internal scratch']
  %s0 = inlined_call_operand.vmem [shape: s32[16,1], index: 0, kind: input, shape index: {}]
  %s1 = inlined_call_operand.hbm [shape: f32[128,128], index: 1, kind: input, shape index: {}]
  %s2 = inlined_call_operand.vmem [shape: f32[16,128], index: 2, kind: output, shape index: {0}]
  %s3 = inlined_call_operand.vmem [shape: s32[8,128], index: 3, kind: output, shape index: {1}]
  %4 = xla_tuple %s2, %s3
  %s5 = sld [smem:[#allocation0]]
  $region30: #{linear_model_forward.1} parent=0
    _
  %s7 = ssub.s32 1, %s5
  %s8 = scalar_select 0, %s7, %s5
  $region1: #{linear_model_forward.1} parent=0
    #allocation2 [shape = 'u8[65536]{0}', space=vmem, size = 0x10000, scoped, tag = 'input window, operand 1, single buffered']
    #allocation3 [shape = 's32[1]{0}', space=sflag, size = 0x4, scoped, tag = 'scoped memory for linear_model_forward.1']
    %9 = vsyncpa [#allocation3], 0
    // Predicated region
    $region2: #{linear_model_forward.1} parent=1 // pred_check
      _
    $region3: #{linear_model_forward.1} parent=1 // pred_check_branch
      %11 = sbr.rel (0) target = $region5
    $region4: #{linear_model_forward.1} parent=1 // pred_region
      _
    $region5: #{linear_model_forward.1} parent=1 // pred_fallthru
      _
    // Predicated region
    $region6: #{linear_model_forward.1} parent=1 // pred_check
      _
    $region7: #{linear_model_forward.1} parent=1 // pred_check_branch
      %13 = sbr.rel (0) target = $region9
    $region8: #{linear_model_forward.1} parent=1 // pred_region
      %s15 = ssub.s32 2048, 2048
      %16 = vsyncadd [#allocation3], %s15
      %s17 = sshll.u32 [#allocation2], 4
      %s18 = int_to_ptr.vmem [resolvable:$true] %s17
      %23 = dma.hbm_to_vmem [thread:$0]  %s1, 2048, %s18, [#allocation3], 128, 128, 8
    $region9: #{linear_model_forward.1} parent=1 // pred_fallthru
      _
    // Predicated region
    $region10: #{linear_model_forward.1} parent=1 // pred_check
      _
    $region11: #{linear_model_forward.1} parent=1 // pred_check_branch
      %25 = sbr.rel (0) target = $region13
    $region12: #{linear_model_forward.1} parent=1 // pred_region
      %26 = dma.done [#allocation3], 2048
    $region13: #{linear_model_forward.1} parent=1 // pred_fallthru
      _
    %v27 = vld [vmem:[%s0] sm:$0xff]
    %v28 = vld [vmem:[%s0 + $0x8] sm:$0xff]
    %v29 = vlaneseq
    %v30 = vand.u32 %v29, 127
    %31 = vset.pattern.permute.xlu0 0
    %32 = vperm.xlu0 %31, %v27
    %v33 = vpop.permute.xlu0 %32
    %34 = vset.pattern.permute.xlu0 0
    %35 = vperm.xlu0 %34, %v28
    %v36 = vpop.permute.xlu0 %35
    %vm37 = vcmp.eq.s32.totalorder %v33, %v30
    %vm38 = vcmp.eq.s32.totalorder %v36, %v30
    %v39 = vsel %vm37, 1, 0
    %v40 = vsel %vm38, 1, 0
    %v41 = vcvt.s32.f32 %v39
    %v42 = vcvt.s32.f32 %v40
    %v43 = vld [vmem:[#allocation2] sm:$0xff]
    %v44 = vld [vmem:[#allocation2 + $0x8] sm:$0xff]
    %v45 = vld [vmem:[#allocation2 + $0x10] sm:$0xff]
    %v46 = vld [vmem:[#allocation2 + $0x18] sm:$0xff]
    %v47 = vld [vmem:[#allocation2 + $0x20] sm:$0xff]
    %v48 = vld [vmem:[#allocation2 + $0x28] sm:$0xff]
    %v49 = vld [vmem:[#allocation2 + $0x30] sm:$0xff]
    %v50 = vld [vmem:[#allocation2 + $0x38] sm:$0xff]
    %v51 = vld [vmem:[#allocation2 + $0x40] sm:$0xff]
    %v52 = vld [vmem:[#allocation2 + $0x48] sm:$0xff]
    %v53 = vld [vmem:[#allocation2 + $0x50] sm:$0xff]
    %v54 = vld [vmem:[#allocation2 + $0x58] sm:$0xff]
    %v55 = vld [vmem:[#allocation2 + $0x60] sm:$0xff]
    %v56 = vld [vmem:[#allocation2 + $0x68] sm:$0xff]
    %v57 = vld [vmem:[#allocation2 + $0x70] sm:$0xff]
    %v58 = vld [vmem:[#allocation2 + $0x78] sm:$0xff]
    %59 = vmatprep.subr.mxu0 0.0
    %v60 = vand.u32 %v43, 4294901760
    %61 = vmatpush1.msra.mxu0 %v60
    %62 = vmatprep.subr.mxu0 0.0
    %v63 = vand.u32 %v44, 4294901760
    %64 = vmatpush1.msra.mxu0 %v63
    %65 = vmatprep.subr.mxu0 0.0
    %v66 = vand.u32 %v45, 4294901760
    %67 = vmatpush1.msra.mxu0 %v66
    %68 = vmatprep.subr.mxu0 0.0
    %v69 = vand.u32 %v46, 4294901760
    %70 = vmatpush1.msra.mxu0 %v69
    %71 = vmatprep.subr.mxu0 0.0
    %v72 = vand.u32 %v47, 4294901760
    %73 = vmatpush1.msra.mxu0 %v72
    %74 = vmatprep.subr.mxu0 0.0
    %v75 = vand.u32 %v48, 4294901760
    %76 = vmatpush1.msra.mxu0 %v75
    %77 = vmatprep.subr.mxu0 0.0
    %v78 = vand.u32 %v49, 4294901760
    %79 = vmatpush1.msra.mxu0 %v78
    %80 = vmatprep.subr.mxu0 0.0
    %v81 = vand.u32 %v50, 4294901760
    %82 = vmatpush1.msra.mxu0 %v81
    %83 = vmatprep.subr.mxu0 0.0
    %v84 = vand.u32 %v51, 4294901760
    %85 = vmatpush1.msra.mxu0 %v84
    %86 = vmatprep.subr.mxu0 0.0
    %v87 = vand.u32 %v52, 4294901760
    %88 = vmatpush1.msra.mxu0 %v87
    %89 = vmatprep.subr.mxu0 0.0
    %v90 = vand.u32 %v53, 4294901760
    %91 = vmatpush1.msra.mxu0 %v90
    %92 = vmatprep.subr.mxu0 0.0
    %v93 = vand.u32 %v54, 4294901760
    %94 = vmatpush1.msra.mxu0 %v93
    %95 = vmatprep.subr.mxu0 0.0
    %v96 = vand.u32 %v55, 4294901760
    %97 = vmatpush1.msra.mxu0 %v96
    %98 = vmatprep.subr.mxu0 0.0
    %v99 = vand.u32 %v56, 4294901760
    %100 = vmatpush1.msra.mxu0 %v99
    %101 = vmatprep.subr.mxu0 0.0
    %v102 = vand.u32 %v57, 4294901760
    %103 = vmatpush1.msra.mxu0 %v102
    %104 = vmatprep.subr.mxu0 0.0
    %v105 = vand.u32 %v58, 4294901760
    %106 = vmatpush1.msra.mxu0 %v105
    %107 = vmatprep.subr.mxu0 0.0
    %108 = vmatpush1.msra.mxu0 0.0
    %109 = vmatprep.subr.mxu0 0.0
    %110 = vmatpush1.msra.mxu0 0.0
    %111 = vmatprep.subr.mxu0 0.0
    %112 = vmatpush1.msra.mxu0 0.0
    %113 = vmatprep.subr.mxu0 0.0
    %114 = vmatpush1.msra.mxu0 0.0
    %115 = vmatprep.subr.mxu0 0.0
    %116 = vmatpush1.msra.mxu0 0.0
    %117 = vmatprep.subr.mxu0 0.0
    %118 = vmatpush1.msra.mxu0 0.0
    %119 = vmatprep.subr.mxu0 0.0
    %120 = vmatpush1.msra.mxu0 0.0
    %121 = vmatprep.subr.mxu0 0.0
    %122 = vmatpush1.msra.mxu0 0.0
    %123 = vmatprep.subr.mxu0 0.0
    %124 = vmatpush1.msra.mxu0 0.0
    %125 = vmatprep.subr.mxu0 0.0
    %126 = vmatpush1.msra.mxu0 0.0
    %127 = vmatprep.subr.mxu0 0.0
    %128 = vmatpush1.msra.mxu0 0.0
    %129 = vmatprep.subr.mxu0 0.0
    %130 = vmatpush1.msra.mxu0 0.0
    %131 = vmatprep.subr.mxu0 0.0
    %132 = vmatpush1.msra.mxu0 0.0
    %133 = vmatprep.subr.mxu0 0.0
    %134 = vmatpush1.msra.mxu0 0.0
    %135 = vmatprep.subr.mxu0 0.0
    %136 = vmatpush1.msra.mxu0 0.0
    %137 = vmatprep.subr.mxu0 0.0
    %138 = vmatpush1.msra.mxu0 0.0
    %139 = vmatprep.mubr.f32.mxu0 0.0
    %v140 = vand.u32 %v41, 4294901760
    %v141 = vsub.f32 %v41, %v140
    %v142 = vand.u32 %v141, 4294901760
    %v143 = vsub.f32 %v141, %v142
    %v144 = vand.u32 %v143, 4294901760
    %145 = vmatmul.mubr.f32.gmra.mrb[0].mxu0 %v144
    %v146 = vpop.f32.mrb[0].mxu0
    %v147 = vadd.f32 0.0, %v146
    %v148 = vpop.f32.mrb[0].mxu0
    %149 = vmatprep.mubr.f32.mxu0 0.0
    %v150 = vand.u32 %v42, 4294901760
    %v151 = vsub.f32 %v42, %v150
    %v152 = vand.u32 %v151, 4294901760
    %v153 = vsub.f32 %v151, %v152
    %v154 = vand.u32 %v153, 4294901760
    %155 = vmatmul.mubr.f32.gmra.mrb[0].mxu0 %v154
    %v156 = vpop.f32.mrb[0].mxu0
    %v157 = vadd.f32 0.0, %v156
    %v158 = vpop.f32.mrb[0].mxu0
    %159 = vdwg.mxu0
    %160 = vmatprep.subr.mxu0 0.0
    %v161 = vand.u32 %v43, 4294901760
    %v162 = vsub.f32 %v43, %v161
    %v163 = vand.u32 %v162, 4294901760
    %v164 = vsub.f32 %v162, %v163
    %v165 = vand.u32 %v164, 4294901760
    %166 = vmatpush1.msra.mxu0 %v165
    %167 = vmatprep.subr.mxu0 0.0
    %v168 = vand.u32 %v44, 4294901760
    %v169 = vsub.f32 %v44, %v168
    %v170 = vand.u32 %v169, 4294901760
    %v171 = vsub.f32 %v169, %v170
    %v172 = vand.u32 %v171, 4294901760
    %173 = vmatpush1.msra.mxu0 %v172
    %174 = vmatprep.subr.mxu0 0.0
    %v175 = vand.u32 %v45, 4294901760
    %v176 = vsub.f32 %v45, %v175
    %v177 = vand.u32 %v176, 4294901760
    %v178 = vsub.f32 %v176, %v177
    %v179 = vand.u32 %v178, 4294901760
    %180 = vmatpush1.msra.mxu0 %v179
    %181 = vmatprep.subr.mxu0 0.0
    %v182 = vand.u32 %v46, 4294901760
    %v183 = vsub.f32 %v46, %v182
    %v184 = vand.u32 %v183, 4294901760
    %v185 = vsub.f32 %v183, %v184
    %v186 = vand.u32 %v185, 4294901760
    %187 = vmatpush1.msra.mxu0 %v186
    %188 = vmatprep.subr.mxu0 0.0
    %v189 = vand.u32 %v47, 4294901760
    %v190 = vsub.f32 %v47, %v189
    %v191 = vand.u32 %v190, 4294901760
    %v192 = vsub.f32 %v190, %v191
    %v193 = vand.u32 %v192, 4294901760
    %194 = vmatpush1.msra.mxu0 %v193
    %195 = vmatprep.subr.mxu0 0.0
    %v196 = vand.u32 %v48, 4294901760
    %v197 = vsub.f32 %v48, %v196
    %v198 = vand.u32 %v197, 4294901760
    %v199 = vsub.f32 %v197, %v198
    %v200 = vand.u32 %v199, 4294901760
    %201 = vmatpush1.msra.mxu0 %v200
    %202 = vmatprep.subr.mxu0 0.0
    %v203 = vand.u32 %v49, 4294901760
    %v204 = vsub.f32 %v49, %v203
    %v205 = vand.u32 %v204, 4294901760
    %v206 = vsub.f32 %v204, %v205
    %v207 = vand.u32 %v206, 4294901760
    %208 = vmatpush1.msra.mxu0 %v207
    %209 = vmatprep.subr.mxu0 0.0
    %v210 = vand.u32 %v50, 4294901760
    %v211 = vsub.f32 %v50, %v210
    %v212 = vand.u32 %v211, 4294901760
    %v213 = vsub.f32 %v211, %v212
    %v214 = vand.u32 %v213, 4294901760
    %215 = vmatpush1.msra.mxu0 %v214
    %216 = vmatprep.subr.mxu0 0.0
    %v217 = vand.u32 %v51, 4294901760
    %v218 = vsub.f32 %v51, %v217
    %v219 = vand.u32 %v218, 4294901760
    %v220 = vsub.f32 %v218, %v219
    %v221 = vand.u32 %v220, 4294901760
    %222 = vmatpush1.msra.mxu0 %v221
    %223 = vmatprep.subr.mxu0 0.0
    %v224 = vand.u32 %v52, 4294901760
    %v225 = vsub.f32 %v52, %v224
    %v226 = vand.u32 %v225, 4294901760
    %v227 = vsub.f32 %v225, %v226
    %v228 = vand.u32 %v227, 4294901760
    %229 = vmatpush1.msra.mxu0 %v228
    %230 = vmatprep.subr.mxu0 0.0
    %v231 = vand.u32 %v53, 4294901760
    %v232 = vsub.f32 %v53, %v231
    %v233 = vand.u32 %v232, 4294901760
    %v234 = vsub.f32 %v232, %v233
    %v235 = vand.u32 %v234, 4294901760
    %236 = vmatpush1.msra.mxu0 %v235
    %237 = vmatprep.subr.mxu0 0.0
    %v238 = vand.u32 %v54, 4294901760
    %v239 = vsub.f32 %v54, %v238
    %v240 = vand.u32 %v239, 4294901760
    %v241 = vsub.f32 %v239, %v240
    %v242 = vand.u32 %v241, 4294901760
    %243 = vmatpush1.msra.mxu0 %v242
    %244 = vmatprep.subr.mxu0 0.0
    %v245 = vand.u32 %v55, 4294901760
    %v246 = vsub.f32 %v55, %v245
    %v247 = vand.u32 %v246, 4294901760
    %v248 = vsub.f32 %v246, %v247
    %v249 = vand.u32 %v248, 4294901760
    %250 = vmatpush1.msra.mxu0 %v249
    %251 = vmatprep.subr.mxu0 0.0
    %v252 = vand.u32 %v56, 4294901760
    %v253 = vsub.f32 %v56, %v252
    %v254 = vand.u32 %v253, 4294901760
    %v255 = vsub.f32 %v253, %v254
    %v256 = vand.u32 %v255, 4294901760
    %257 = vmatpush1.msra.mxu0 %v256
    %258 = vmatprep.subr.mxu0 0.0
    %v259 = vand.u32 %v57, 4294901760
    %v260 = vsub.f32 %v57, %v259
    %v261 = vand.u32 %v260, 4294901760
    %v262 = vsub.f32 %v260, %v261
    %v263 = vand.u32 %v262, 4294901760
    %264 = vmatpush1.msra.mxu0 %v263
    %265 = vmatprep.subr.mxu0 0.0
    %v266 = vand.u32 %v58, 4294901760
    %v267 = vsub.f32 %v58, %v266
    %v268 = vand.u32 %v267, 4294901760
    %v269 = vsub.f32 %v267, %v268
    %v270 = vand.u32 %v269, 4294901760
    %271 = vmatpush1.msra.mxu0 %v270
    %272 = vmatprep.subr.mxu0 0.0
    %273 = vmatpush1.msra.mxu0 0.0
    %274 = vmatprep.subr.mxu0 0.0
    %275 = vmatpush1.msra.mxu0 0.0
    %276 = vmatprep.subr.mxu0 0.0
    %277 = vmatpush1.msra.mxu0 0.0
    %278 = vmatprep.subr.mxu0 0.0
    %279 = vmatpush1.msra.mxu0 0.0
    %280 = vmatprep.subr.mxu0 0.0
    %281 = vmatpush1.msra.mxu0 0.0
    %282 = vmatprep.subr.mxu0 0.0
    %283 = vmatpush1.msra.mxu0 0.0
    %284 = vmatprep.subr.mxu0 0.0
    %285 = vmatpush1.msra.mxu0 0.0
    %286 = vmatprep.subr.mxu0 0.0
    %287 = vmatpush1.msra.mxu0 0.0
    %288 = vmatprep.subr.mxu0 0.0
    %289 = vmatpush1.msra.mxu0 0.0
    %290 = vmatprep.subr.mxu0 0.0
    %291 = vmatpush1.msra.mxu0 0.0
    %292 = vmatprep.subr.mxu0 0.0
    %293 = vmatpush1.msra.mxu0 0.0
    %294 = vmatprep.subr.mxu0 0.0
    %295 = vmatpush1.msra.mxu0 0.0
    %296 = vmatprep.subr.mxu0 0.0
    %297 = vmatpush1.msra.mxu0 0.0
    %298 = vmatprep.subr.mxu0 0.0
    %299 = vmatpush1.msra.mxu0 0.0
    %300 = vmatprep.subr.mxu0 0.0
    %301 = vmatpush1.msra.mxu0 0.0
    %302 = vmatprep.subr.mxu0 0.0
    %303 = vmatpush1.msra.mxu0 0.0
    %304 = vmatprep.mubr.f32.mxu0 0.0
    %v305 = vand.u32 %v41, 4294901760
    %306 = vmatmul.mubr.f32.gmra.mrb[0].mxu0 %v305
    %v307 = vpop.f32.mrb[0].mxu0
    %v308 = vadd.f32 %v147, %v307
    %v309 = vpop.f32.mrb[0].mxu0
    %310 = vmatprep.mubr.f32.mxu0 0.0
    %v311 = vand.u32 %v42, 4294901760
    %312 = vmatmul.mubr.f32.gmra.mrb[0].mxu0 %v311
    %v313 = vpop.f32.mrb[0].mxu0
    %v314 = vadd.f32 %v157, %v313
    %v315 = vpop.f32.mrb[0].mxu0
    %316 = vdwg.mxu0
    %317 = vmatprep.subr.mxu0 0.0
    %v318 = vand.u32 %v43, 4294901760
    %v319 = vsub.f32 %v43, %v318
    %320 = vmatpush1.msra.mxu0 %v319
    %321 = vmatprep.subr.mxu0 0.0
    %v322 = vand.u32 %v44, 4294901760
    %v323 = vsub.f32 %v44, %v322
    %324 = vmatpush1.msra.mxu0 %v323
    %325 = vmatprep.subr.mxu0 0.0
    %v326 = vand.u32 %v45, 4294901760
    %v327 = vsub.f32 %v45, %v326
    %328 = vmatpush1.msra.mxu0 %v327
    %329 = vmatprep.subr.mxu0 0.0
    %v330 = vand.u32 %v46, 4294901760
    %v331 = vsub.f32 %v46, %v330
    %332 = vmatpush1.msra.mxu0 %v331
    %333 = vmatprep.subr.mxu0 0.0
    %v334 = vand.u32 %v47, 4294901760
    %v335 = vsub.f32 %v47, %v334
    %336 = vmatpush1.msra.mxu0 %v335
    %337 = vmatprep.subr.mxu0 0.0
    %v338 = vand.u32 %v48, 4294901760
    %v339 = vsub.f32 %v48, %v338
    %340 = vmatpush1.msra.mxu0 %v339
    %341 = vmatprep.subr.mxu0 0.0
    %v342 = vand.u32 %v49, 4294901760
    %v343 = vsub.f32 %v49, %v342
    %344 = vmatpush1.msra.mxu0 %v343
    %345 = vmatprep.subr.mxu0 0.0
    %v346 = vand.u32 %v50, 4294901760
    %v347 = vsub.f32 %v50, %v346
    %348 = vmatpush1.msra.mxu0 %v347
    %349 = vmatprep.subr.mxu0 0.0
    %v350 = vand.u32 %v51, 4294901760
    %v351 = vsub.f32 %v51, %v350
    %352 = vmatpush1.msra.mxu0 %v351
    %353 = vmatprep.subr.mxu0 0.0
    %v354 = vand.u32 %v52, 4294901760
    %v355 = vsub.f32 %v52, %v354
    %356 = vmatpush1.msra.mxu0 %v355
    %357 = vmatprep.subr.mxu0 0.0
    %v358 = vand.u32 %v53, 4294901760
    %v359 = vsub.f32 %v53, %v358
    %360 = vmatpush1.msra.mxu0 %v359
    %361 = vmatprep.subr.mxu0 0.0
    %v362 = vand.u32 %v54, 4294901760
    %v363 = vsub.f32 %v54, %v362
    %364 = vmatpush1.msra.mxu0 %v363
    %365 = vmatprep.subr.mxu0 0.0
    %v366 = vand.u32 %v55, 4294901760
    %v367 = vsub.f32 %v55, %v366
    %368 = vmatpush1.msra.mxu0 %v367
    %369 = vmatprep.subr.mxu0 0.0
    %v370 = vand.u32 %v56, 4294901760
    %v371 = vsub.f32 %v56, %v370
    %372 = vmatpush1.msra.mxu0 %v371
    %373 = vmatprep.subr.mxu0 0.0
    %v374 = vand.u32 %v57, 4294901760
    %v375 = vsub.f32 %v57, %v374
    %376 = vmatpush1.msra.mxu0 %v375
    %377 = vmatprep.subr.mxu0 0.0
    %v378 = vand.u32 %v58, 4294901760
    %v379 = vsub.f32 %v58, %v378
    %380 = vmatpush1.msra.mxu0 %v379
    %381 = vmatprep.subr.mxu0 0.0
    %382 = vmatpush1.msra.mxu0 0.0
    %383 = vmatprep.subr.mxu0 0.0
    %384 = vmatpush1.msra.mxu0 0.0
    %385 = vmatprep.subr.mxu0 0.0
    %386 = vmatpush1.msra.mxu0 0.0
    %387 = vmatprep.subr.mxu0 0.0
    %388 = vmatpush1.msra.mxu0 0.0
    %389 = vmatprep.subr.mxu0 0.0
    %390 = vmatpush1.msra.mxu0 0.0
    %391 = vmatprep.subr.mxu0 0.0
    %392 = vmatpush1.msra.mxu0 0.0
    %393 = vmatprep.subr.mxu0 0.0
    %394 = vmatpush1.msra.mxu0 0.0
    %395 = vmatprep.subr.mxu0 0.0
    %396 = vmatpush1.msra.mxu0 0.0
    %397 = vmatprep.subr.mxu0 0.0
    %398 = vmatpush1.msra.mxu0 0.0
    %399 = vmatprep.subr.mxu0 0.0
    %400 = vmatpush1.msra.mxu0 0.0
    %401 = vmatprep.subr.mxu0 0.0
    %402 = vmatpush1.msra.mxu0 0.0
    %403 = vmatprep.subr.mxu0 0.0
    %404 = vmatpush1.msra.mxu0 0.0
    %405 = vmatprep.subr.mxu0 0.0
    %406 = vmatpush1.msra.mxu0 0.0
    %407 = vmatprep.subr.mxu0 0.0
    %408 = vmatpush1.msra.mxu0 0.0
    %409 = vmatprep.subr.mxu0 0.0
    %410 = vmatpush1.msra.mxu0 0.0
    %411 = vmatprep.subr.mxu0 0.0
    %412 = vmatpush1.msra.mxu0 0.0
    %413 = vmatprep.mubr.f32.mxu0 0.0
    %v414 = vand.u32 %v41, 4294901760
    %v415 = vsub.f32 %v41, %v414
    %416 = vmatmul.mubr.f32.gmra.mrb[0].mxu0 %v415
    %v417 = vpop.f32.mrb[0].mxu0
    %v418 = vadd.f32 %v308, %v417
    %v419 = vpop.f32.mrb[0].mxu0
    %420 = vmatprep.mubr.f32.mxu0 0.0
    %v421 = vand.u32 %v42, 4294901760
    %v422 = vsub.f32 %v42, %v421
    %423 = vmatmul.mubr.f32.gmra.mrb[0].mxu0 %v422
    %v424 = vpop.f32.mrb[0].mxu0
    %v425 = vadd.f32 %v314, %v424
    %v426 = vpop.f32.mrb[0].mxu0
    %427 = vdwg.mxu0
    %428 = vmatprep.subr.mxu0 0.0
    %v429 = vand.u32 %v43, 4294901760
    %430 = vmatpush1.msra.mxu0 %v429
    %431 = vmatprep.subr.mxu0 0.0
    %v432 = vand.u32 %v44, 4294901760
    %433 = vmatpush1.msra.mxu0 %v432
    %434 = vmatprep.subr.mxu0 0.0
    %v435 = vand.u32 %v45, 4294901760
    %436 = vmatpush1.msra.mxu0 %v435
    %437 = vmatprep.subr.mxu0 0.0
    %v438 = vand.u32 %v46, 4294901760
    %439 = vmatpush1.msra.mxu0 %v438
    %440 = vmatprep.subr.mxu0 0.0
    %v441 = vand.u32 %v47, 4294901760
    %442 = vmatpush1.msra.mxu0 %v441
    %443 = vmatprep.subr.mxu0 0.0
    %v444 = vand.u32 %v48, 4294901760
    %445 = vmatpush1.msra.mxu0 %v444
    %446 = vmatprep.subr.mxu0 0.0
    %v447 = vand.u32 %v49, 4294901760
    %448 = vmatpush1.msra.mxu0 %v447
    %449 = vmatprep.subr.mxu0 0.0
    %v450 = vand.u32 %v50, 4294901760
    %451 = vmatpush1.msra.mxu0 %v450
    %452 = vmatprep.subr.mxu0 0.0
    %v453 = vand.u32 %v51, 4294901760
    %454 = vmatpush1.msra.mxu0 %v453
    %455 = vmatprep.subr.mxu0 0.0
    %v456 = vand.u32 %v52, 4294901760
    %457 = vmatpush1.msra.mxu0 %v456
    %458 = vmatprep.subr.mxu0 0.0
    %v459 = vand.u32 %v53, 4294901760
    %460 = vmatpush1.msra.mxu0 %v459
    %461 = vmatprep.subr.mxu0 0.0
    %v462 = vand.u32 %v54, 4294901760
    %463 = vmatpush1.msra.mxu0 %v462
    %464 = vmatprep.subr.mxu0 0.0
    %v465 = vand.u32 %v55, 4294901760
    %466 = vmatpush1.msra.mxu0 %v465
    %467 = vmatprep.subr.mxu0 0.0
    %v468 = vand.u32 %v56, 4294901760
    %469 = vmatpush1.msra.mxu0 %v468
    %470 = vmatprep.subr.mxu0 0.0
    %v471 = vand.u32 %v57, 4294901760
    %472 = vmatpush1.msra.mxu0 %v471
    %473 = vmatprep.subr.mxu0 0.0
    %v474 = vand.u32 %v58, 4294901760
    %475 = vmatpush1.msra.mxu0 %v474
    %476 = vmatprep.subr.mxu0 0.0
    %477 = vmatpush1.msra.mxu0 0.0
    %478 = vmatprep.subr.mxu0 0.0
    %479 = vmatpush1.msra.mxu0 0.0
    %480 = vmatprep.subr.mxu0 0.0
    %481 = vmatpush1.msra.mxu0 0.0
    %482 = vmatprep.subr.mxu0 0.0
    %483 = vmatpush1.msra.mxu0 0.0
    %484 = vmatprep.subr.mxu0 0.0
    %485 = vmatpush1.msra.mxu0 0.0
    %486 = vmatprep.subr.mxu0 0.0
    %487 = vmatpush1.msra.mxu0 0.0
    %488 = vmatprep.subr.mxu0 0.0
    %489 = vmatpush1.msra.mxu0 0.0
    %490 = vmatprep.subr.mxu0 0.0
    %491 = vmatpush1.msra.mxu0 0.0
    %492 = vmatprep.subr.mxu0 0.0
    %493 = vmatpush1.msra.mxu0 0.0
    %494 = vmatprep.subr.mxu0 0.0
    %495 = vmatpush1.msra.mxu0 0.0
    %496 = vmatprep.subr.mxu0 0.0
    %497 = vmatpush1.msra.mxu0 0.0
    %498 = vmatprep.subr.mxu0 0.0
    %499 = vmatpush1.msra.mxu0 0.0
    %500 = vmatprep.subr.mxu0 0.0
    %501 = vmatpush1.msra.mxu0 0.0
    %502 = vmatprep.subr.mxu0 0.0
    %503 = vmatpush1.msra.mxu0 0.0
    %504 = vmatprep.subr.mxu0 0.0
    %505 = vmatpush1.msra.mxu0 0.0
    %506 = vmatprep.subr.mxu0 0.0
    %507 = vmatpush1.msra.mxu0 0.0
    %508 = vmatprep.mubr.f32.mxu0 0.0
    %v509 = vand.u32 %v41, 4294901760
    %v510 = vsub.f32 %v41, %v509
    %v511 = vand.u32 %v510, 4294901760
    %512 = vmatmul.mubr.f32.gmra.mrb[0].mxu0 %v511
    %v513 = vpop.f32.mrb[0].mxu0
    %v514 = vadd.f32 %v418, %v513
    %v515 = vpop.f32.mrb[0].mxu0
    %516 = vmatprep.mubr.f32.mxu0 0.0
    %v517 = vand.u32 %v42, 4294901760
    %v518 = vsub.f32 %v42, %v517
    %v519 = vand.u32 %v518, 4294901760
    %520 = vmatmul.mubr.f32.gmra.mrb[0].mxu0 %v519
    %v521 = vpop.f32.mrb[0].mxu0
    %v522 = vadd.f32 %v425, %v521
    %v523 = vpop.f32.mrb[0].mxu0
    %524 = vdwg.mxu0
    %525 = vmatprep.subr.mxu0 0.0
    %v526 = vand.u32 %v43, 4294901760
    %v527 = vsub.f32 %v43, %v526
    %v528 = vand.u32 %v527, 4294901760
    %529 = vmatpush1.msra.mxu0 %v528
    %530 = vmatprep.subr.mxu0 0.0
    %v531 = vand.u32 %v44, 4294901760
    %v532 = vsub.f32 %v44, %v531
    %v533 = vand.u32 %v532, 4294901760
    %534 = vmatpush1.msra.mxu0 %v533
    %535 = vmatprep.subr.mxu0 0.0
    %v536 = vand.u32 %v45, 4294901760
    %v537 = vsub.f32 %v45, %v536
    %v538 = vand.u32 %v537, 4294901760
    %539 = vmatpush1.msra.mxu0 %v538
    %540 = vmatprep.subr.mxu0 0.0
    %v541 = vand.u32 %v46, 4294901760
    %v542 = vsub.f32 %v46, %v541
    %v543 = vand.u32 %v542, 4294901760
    %544 = vmatpush1.msra.mxu0 %v543
    %545 = vmatprep.subr.mxu0 0.0
    %v546 = vand.u32 %v47, 4294901760
    %v547 = vsub.f32 %v47, %v546
    %v548 = vand.u32 %v547, 4294901760
    %549 = vmatpush1.msra.mxu0 %v548
    %550 = vmatprep.subr.mxu0 0.0
    %v551 = vand.u32 %v48, 4294901760
    %v552 = vsub.f32 %v48, %v551
    %v553 = vand.u32 %v552, 4294901760
    %554 = vmatpush1.msra.mxu0 %v553
    %555 = vmatprep.subr.mxu0 0.0
    %v556 = vand.u32 %v49, 4294901760
    %v557 = vsub.f32 %v49, %v556
    %v558 = vand.u32 %v557, 4294901760
    %559 = vmatpush1.msra.mxu0 %v558
    %560 = vmatprep.subr.mxu0 0.0
    %v561 = vand.u32 %v50, 4294901760
    %v562 = vsub.f32 %v50, %v561
    %v563 = vand.u32 %v562, 4294901760
    %564 = vmatpush1.msra.mxu0 %v563
    %565 = vmatprep.subr.mxu0 0.0
    %v566 = vand.u32 %v51, 4294901760
    %v567 = vsub.f32 %v51, %v566
    %v568 = vand.u32 %v567, 4294901760
    %569 = vmatpush1.msra.mxu0 %v568
    %570 = vmatprep.subr.mxu0 0.0
    %v571 = vand.u32 %v52, 4294901760
    %v572 = vsub.f32 %v52, %v571
    %v573 = vand.u32 %v572, 4294901760
    %574 = vmatpush1.msra.mxu0 %v573
    %575 = vmatprep.subr.mxu0 0.0
    %v576 = vand.u32 %v53, 4294901760
    %v577 = vsub.f32 %v53, %v576
    %v578 = vand.u32 %v577, 4294901760
    %579 = vmatpush1.msra.mxu0 %v578
    %580 = vmatprep.subr.mxu0 0.0
    %v581 = vand.u32 %v54, 4294901760
    %v582 = vsub.f32 %v54, %v581
    %v583 = vand.u32 %v582, 4294901760
    %584 = vmatpush1.msra.mxu0 %v583
    %585 = vmatprep.subr.mxu0 0.0
    %v586 = vand.u32 %v55, 4294901760
    %v587 = vsub.f32 %v55, %v586
    %v588 = vand.u32 %v587, 4294901760
    %589 = vmatpush1.msra.mxu0 %v588
    %590 = vmatprep.subr.mxu0 0.0
    %v591 = vand.u32 %v56, 4294901760
    %v592 = vsub.f32 %v56, %v591
    %v593 = vand.u32 %v592, 4294901760
    %594 = vmatpush1.msra.mxu0 %v593
    %595 = vmatprep.subr.mxu0 0.0
    %v596 = vand.u32 %v57, 4294901760
    %v597 = vsub.f32 %v57, %v596
    %v598 = vand.u32 %v597, 4294901760
    %599 = vmatpush1.msra.mxu0 %v598
    %600 = vmatprep.subr.mxu0 0.0
    %v601 = vand.u32 %v58, 4294901760
    %v602 = vsub.f32 %v58, %v601
    %v603 = vand.u32 %v602, 4294901760
    %604 = vmatpush1.msra.mxu0 %v603
    %605 = vmatprep.subr.mxu0 0.0
    %606 = vmatpush1.msra.mxu0 0.0
    %607 = vmatprep.subr.mxu0 0.0
    %608 = vmatpush1.msra.mxu0 0.0
    %609 = vmatprep.subr.mxu0 0.0
    %610 = vmatpush1.msra.mxu0 0.0
    %611 = vmatprep.subr.mxu0 0.0
    %612 = vmatpush1.msra.mxu0 0.0
    %613 = vmatprep.subr.mxu0 0.0
    %614 = vmatpush1.msra.mxu0 0.0
    %615 = vmatprep.subr.mxu0 0.0
    %616 = vmatpush1.msra.mxu0 0.0
    %617 = vmatprep.subr.mxu0 0.0
    %618 = vmatpush1.msra.mxu0 0.0
    %619 = vmatprep.subr.mxu0 0.0
    %620 = vmatpush1.msra.mxu0 0.0
    %621 = vmatprep.subr.mxu0 0.0
    %622 = vmatpush1.msra.mxu0 0.0
    %623 = vmatprep.subr.mxu0 0.0
    %624 = vmatpush1.msra.mxu0 0.0
    %625 = vmatprep.subr.mxu0 0.0
    %626 = vmatpush1.msra.mxu0 0.0
    %627 = vmatprep.subr.mxu0 0.0
    %628 = vmatpush1.msra.mxu0 0.0
    %629 = vmatprep.subr.mxu0 0.0
    %630 = vmatpush1.msra.mxu0 0.0
    %631 = vmatprep.subr.mxu0 0.0
    %632 = vmatpush1.msra.mxu0 0.0
    %633 = vmatprep.subr.mxu0 0.0
    %634 = vmatpush1.msra.mxu0 0.0
    %635 = vmatprep.subr.mxu0 0.0
    %636 = vmatpush1.msra.mxu0 0.0
    %637 = vmatprep.mubr.f32.mxu0 0.0
    %v638 = vand.u32 %v41, 4294901760
    %639 = vmatmul.mubr.f32.gmra.mrb[0].mxu0 %v638
    %v640 = vpop.f32.mrb[0].mxu0
    %v641 = vadd.f32 %v514, %v640
    %v642 = vpop.f32.mrb[0].mxu0
    %643 = vmatprep.mubr.f32.mxu0 0.0
    %v644 = vand.u32 %v42, 4294901760
    %645 = vmatmul.mubr.f32.gmra.mrb[0].mxu0 %v644
    %v646 = vpop.f32.mrb[0].mxu0
    %v647 = vadd.f32 %v522, %v646
    %v648 = vpop.f32.mrb[0].mxu0
    %649 = vdwg.mxu0
    %650 = vmatprep.subr.mxu0 0.0
    %v651 = vand.u32 %v43, 4294901760
    %652 = vmatpush1.msra.mxu0 %v651
    %653 = vmatprep.subr.mxu0 0.0
    %v654 = vand.u32 %v44, 4294901760
    %655 = vmatpush1.msra.mxu0 %v654
    %656 = vmatprep.subr.mxu0 0.0
    %v657 = vand.u32 %v45, 4294901760
    %658 = vmatpush1.msra.mxu0 %v657
    %659 = vmatprep.subr.mxu0 0.0
    %v660 = vand.u32 %v46, 4294901760
    %661 = vmatpush1.msra.mxu0 %v660
    %662 = vmatprep.subr.mxu0 0.0
    %v663 = vand.u32 %v47, 4294901760
    %664 = vmatpush1.msra.mxu0 %v663
    %665 = vmatprep.subr.mxu0 0.0
    %v666 = vand.u32 %v48, 4294901760
    %667 = vmatpush1.msra.mxu0 %v666
    %668 = vmatprep.subr.mxu0 0.0
    %v669 = vand.u32 %v49, 4294901760
    %670 = vmatpush1.msra.mxu0 %v669
    %671 = vmatprep.subr.mxu0 0.0
    %v672 = vand.u32 %v50, 4294901760
    %673 = vmatpush1.msra.mxu0 %v672
    %674 = vmatprep.subr.mxu0 0.0
    %v675 = vand.u32 %v51, 4294901760
    %676 = vmatpush1.msra.mxu0 %v675
    %677 = vmatprep.subr.mxu0 0.0
    %v678 = vand.u32 %v52, 4294901760
    %679 = vmatpush1.msra.mxu0 %v678
    %680 = vmatprep.subr.mxu0 0.0
    %v681 = vand.u32 %v53, 4294901760
    %682 = vmatpush1.msra.mxu0 %v681
    %683 = vmatprep.subr.mxu0 0.0
    %v684 = vand.u32 %v54, 4294901760
    %685 = vmatpush1.msra.mxu0 %v684
    %686 = vmatprep.subr.mxu0 0.0
    %v687 = vand.u32 %v55, 4294901760
    %688 = vmatpush1.msra.mxu0 %v687
    %689 = vmatprep.subr.mxu0 0.0
    %v690 = vand.u32 %v56, 4294901760
    %691 = vmatpush1.msra.mxu0 %v690
    %692 = vmatprep.subr.mxu0 0.0
    %v693 = vand.u32 %v57, 4294901760
    %694 = vmatpush1.msra.mxu0 %v693
    %695 = vmatprep.subr.mxu0 0.0
    %v696 = vand.u32 %v58, 4294901760
    %697 = vmatpush1.msra.mxu0 %v696
    %698 = vmatprep.subr.mxu0 0.0
    %699 = vmatpush1.msra.mxu0 0.0
    %700 = vmatprep.subr.mxu0 0.0
    %701 = vmatpush1.msra.mxu0 0.0
    %702 = vmatprep.subr.mxu0 0.0
    %703 = vmatpush1.msra.mxu0 0.0
    %704 = vmatprep.subr.mxu0 0.0
    %705 = vmatpush1.msra.mxu0 0.0
    %706 = vmatprep.subr.mxu0 0.0
    %707 = vmatpush1.msra.mxu0 0.0
    %708 = vmatprep.subr.mxu0 0.0
    %709 = vmatpush1.msra.mxu0 0.0
    %710 = vmatprep.subr.mxu0 0.0
    %711 = vmatpush1.msra.mxu0 0.0
    %712 = vmatprep.subr.mxu0 0.0
    %713 = vmatpush1.msra.mxu0 0.0
    %714 = vmatprep.subr.mxu0 0.0
    %715 = vmatpush1.msra.mxu0 0.0
    %716 = vmatprep.subr.mxu0 0.0
    %717 = vmatpush1.msra.mxu0 0.0
    %718 = vmatprep.subr.mxu0 0.0
    %719 = vmatpush1.msra.mxu0 0.0
    %720 = vmatprep.subr.mxu0 0.0
    %721 = vmatpush1.msra.mxu0 0.0
    %722 = vmatprep.subr.mxu0 0.0
    %723 = vmatpush1.msra.mxu0 0.0
    %724 = vmatprep.subr.mxu0 0.0
    %725 = vmatpush1.msra.mxu0 0.0
    %726 = vmatprep.subr.mxu0 0.0
    %727 = vmatpush1.msra.mxu0 0.0
    %728 = vmatprep.subr.mxu0 0.0
    %729 = vmatpush1.msra.mxu0 0.0
    %730 = vmatprep.mubr.f32.mxu0 0.0
    %v731 = vand.u32 %v41, 4294901760
    %732 = vmatmul.mubr.f32.gmra.mrb[0].mxu0 %v731
    %v733 = vpop.f32.mrb[0].mxu0
    %v734 = vadd.f32 %v641, %v733
    %v735 = vpop.f32.mrb[0].mxu0
    %736 = vmatprep.mubr.f32.mxu0 0.0
    %v737 = vand.u32 %v42, 4294901760
    %738 = vmatmul.mubr.f32.gmra.mrb[0].mxu0 %v737
    %v739 = vpop.f32.mrb[0].mxu0
    %v740 = vadd.f32 %v647, %v739
    %v741 = vpop.f32.mrb[0].mxu0
    %742 = vdwg.mxu0
    %743 = vst [vmem:[%s2] sm:$0xff] %v734
    %744 = vst [vmem:[%s2 + $0x8] sm:$0xff] %v740
    %vm745 = vcmp.lt.s32.totalorder %v30, 44
    %v746 = vsel %vm745, %v734, -inf
    %v747 = vsel %vm745, %v740, -inf
    %748 = vmax.xlane.f32.xlu0 %v746
    %v749 = vpop.xlane.xlu0 %748
    %750 = vmax.xlane.f32.xlu0 %v747
    %v751 = vpop.xlane.xlu0 %750
    %vm752 = vcmp.eq.f32.partialorder %v734, %v749
    %vm753 = vcmp.eq.f32.partialorder %v740, %v751
    %vm754 = vmand %vm752, %vm745
    %vm755 = vmand %vm753, %vm745
    %v756 = vsel %vm754, %v30, 128
    %v757 = vsel %vm755, %v30, 128
    %v758 = vand.u32 %v756, 65535
    %v759 = vshra.s32 %v756, 16
    %v760 = vcvt.s32.f32 %v758
    %v761 = vcvt.s32.f32 %v759
    %762 = vmin.xlane.f32.xlu0 %v761
    %v763 = vpop.xlane.xlu0 %762
    %vm764 = vcmp.eq.f32.partialorder %v761, %v763
    %v765 = vsel %vm764, %v760, inf
    %766 = vmin.xlane.f32.xlu0 %v765
    %v767 = vpop.xlane.xlu0 %766
    %v768 = vcvt.f32.s32 %v767
    %v769 = vcvt.f32.s32 %v763
    %v770 = vshll.u32 %v769, 16
    %v771 = vadd.s32 %v770, %v768
    %v772 = vand.u32 %v757, 65535
    %v773 = vshra.s32 %v757, 16
    %v774 = vcvt.s32.f32 %v772
    %v775 = vcvt.s32.f32 %v773
    %776 = vmin.xlane.f32.xlu0 %v775
    %v777 = vpop.xlane.xlu0 %776
    %vm778 = vcmp.eq.f32.partialorder %v775, %v777
    %v779 = vsel %vm778, %v774, inf
    %780 = vmin.xlane.f32.xlu0 %v779
    %v781 = vpop.xlane.xlu0 %780
    %v782 = vcvt.f32.s32 %v781
    %v783 = vcvt.f32.s32 %v777
    %v784 = vshll.u32 %v783, 16
    %v785 = vadd.s32 %v784, %v782
    %v786 = vlaneseq
    %v787 = vshrl.u32 %v786, 7
    %v788 = vadd.s32 %v787, 8
    %v789 = vshra.s32 %v787, 3
    %v790 = vshra.s32 %v788, 3
    %v791 = vshra.s32 %v30, 3
    %v792 = vand.u32 %v30, 7
    %vm793 = vcmp.lt.s32.totalorder %v787, 16
    %vm794 = vcmp.lt.s32.totalorder %v788, 16
    %v795 = vsel %vm793, %v789, 4294967295
    %v796 = vsel %vm794, %v790, 4294967295
    %vm797 = vcmp.lt.s32.totalorder %v30, 16
    %v798 = vsel %vm797, %v791, 4294967295
    %v799 = vsel %vm797, %v792, 4294967295
    %vm800 = vcmp.eq.s32.totalorder %v787, %v30
    %vm801 = vcmp.eq.s32.totalorder %v788, %v30
    %v802 = vsel %vm800, %v771, 4294967295
    %v803 = vsel %vm801, %v785, 4294967295
    %vm804 = vcmp.gt.s32.totalorder %v802, %v803
    %v805 = vsel %vm804, %v802, %v803
    %v806 = vrot.slane %v805, 4
    %vm807 = vcmp.gt.s32.totalorder %v805, %v806
    %v808 = vsel %vm807, %v805, %v806
    %v809 = vrot.slane %v808, 2
    %vm810 = vcmp.gt.s32.totalorder %v808, %v809
    %v811 = vsel %vm810, %v808, %v809
    %v812 = vrot.slane %v811, 1
    %vm813 = vcmp.gt.s32.totalorder %v811, %v812
    %v814 = vsel %vm813, %v811, %v812
    %815 = vrot.lane.b32.xlu0 %v814, 1
    %v816 = vpop.permute.xlu0 %815
    %vm817 = vcmp.gt.s32.totalorder %v799, 0
    %vm818 = vcmp.ne.s32.totalorder %v814, %v816
    %vm819 = vmand %vm817, %vm818
    %v820 = vsel %vm819, 1, 0
    %vm821 = vcmp.eq.s32.totalorder %v795, %v798
    %vm822 = vcmp.eq.s32.totalorder %v796, %v798
    %vm823 = vcmp.le.s32.totalorder %v30, %v787
    %vm824 = vcmp.le.s32.totalorder %v30, %v788
    %vm825 = vmand %vm821, %vm823
    %vm826 = vmand %vm822, %vm824
    %v827 = vlaneseq
    %v828 = vshrl.u32 %v827, 7
    %v829 = vsub.s32 0, %v828
    %v830 = vrot.slane %v820, %v829
    %v831 = vsel %vm825, %v830, 0
    %v832 = vsel %vm826, %v830, 0
    %v833 = vand.u32 %v831, 65535
    %v834 = vshrl.u32 %v831, 16
    %v835 = vcvt.s32.f32 %v833
    %v836 = vcvt.s32.f32 %v834
    %837 = vadd.xlane.f32.xlu0 %v835
    %v838 = vpop.xlane.xlu0 %837
    %839 = vadd.xlane.f32.xlu0 %v836
    %v840 = vpop.xlane.xlu0 %839
    %v841 = vcvt.f32.s32 %v838
    %v842 = vcvt.f32.s32 %v840
    %v843 = vshll.u32 %v842, 16
    %v844 = vadd.s32 %v843, %v841
    %v845 = vand.u32 %v832, 65535
    %v846 = vshrl.u32 %v832, 16
    %v847 = vcvt.s32.f32 %v845
    %v848 = vcvt.s32.f32 %v846
    %849 = vadd.xlane.f32.xlu0 %v847
    %v850 = vpop.xlane.xlu0 %849
    %851 = vadd.xlane.f32.xlu0 %v848
    %v852 = vpop.xlane.xlu0 %851
    %v853 = vcvt.f32.s32 %v850
    %v854 = vcvt.f32.s32 %v852
    %v855 = vshll.u32 %v854, 16
    %v856 = vadd.s32 %v855, %v853
    %v857 = vsel %vm800, %v844, 4294967295
    %v858 = vsel %vm801, %v856, 4294967295
    %vm859 = vcmp.gt.s32.totalorder %v857, %v858
    %v860 = vsel %vm859, %v857, %v858
    %v861 = vrot.slane %v860, 4
    %vm862 = vcmp.gt.s32.totalorder %v860, %v861
    %v863 = vsel %vm862, %v860, %v861
    %v864 = vrot.slane %v863, 2
    %vm865 = vcmp.gt.s32.totalorder %v863, %v864
    %v866 = vsel %vm865, %v863, %v864
    %v867 = vrot.slane %v866, 1
    %vm868 = vcmp.gt.s32.totalorder %v866, %v867
    %v869 = vsel %vm868, %v866, %v867
    %vm870 = vcmp.eq.s32.totalorder %v844, %v799
    %vm871 = vcmp.eq.s32.totalorder %v856, %v799
    %vm872 = vmand %vm821, %vm870
    %vm873 = vmand %vm822, %vm871
    %v874 = vsel %vm872, %v771, 4294967295
    %v875 = vsel %vm873, %v785, 4294967295
    %vm876 = vcmp.gt.s32.totalorder %v874, %v875
    %v877 = vsel %vm876, %v874, %v875
    %v878 = vrot.slane %v877, 4
    %vm879 = vcmp.gt.s32.totalorder %v877, %v878
    %v880 = vsel %vm879, %v877, %v878
    %v881 = vrot.slane %v880, 2
    %vm882 = vcmp.gt.s32.totalorder %v880, %v881
    %v883 = vsel %vm882, %v880, %v881
    %v884 = vrot.slane %v883, 1
    %vm885 = vcmp.gt.s32.totalorder %v883, %v884
    %v886 = vsel %vm885, %v883, %v884
    %vm887 = vcmp.ge.s32.totalorder %v886, 0
    %v888 = vsel %vm887, %v886, 43
    %vm889 = vcmp.eq.s32.totalorder %v787, 0
    %vm890 = vcmp.eq.s32.totalorder %v787, 1
    %vm891 = vcmp.eq.s32.totalorder %v787, 2
    %v892 = vsel %vm891, %v869, 0
    %v893 = vsel %vm890, %v888, %v892
    %v894 = vsel %vm889, %v814, %v893
    %895 = vst [vmem:[%s3] sm:$0xff] %v894
    // Predicated region
    $region14: #{linear_model_forward.1} parent=1 // pred_check
      _
    $region15: #{linear_model_forward.1} parent=1 // pred_check_branch
      %897 = sbr.rel (0) target = $region17
    $region16: #{linear_model_forward.1} parent=1 // pred_region
      _
    $region17: #{linear_model_forward.1} parent=1 // pred_fallthru
      _
    // Predicated region
    $region18: #{linear_model_forward.1} parent=1 // pred_check
      _
    $region19: #{linear_model_forward.1} parent=1 // pred_check_branch
      %899 = sbr.rel (0) target = $region21
    $region20: #{linear_model_forward.1} parent=1 // pred_region
      _
    $region21: #{linear_model_forward.1} parent=1 // pred_fallthru
      _
    // Predicated region
    $region22: #{linear_model_forward.1} parent=1 // pred_check
      _
    $region23: #{linear_model_forward.1} parent=1 // pred_check_branch
      %901 = sbr.rel (0) target = $region25
    $region24: #{linear_model_forward.1} parent=1 // pred_region
      _
    $region25: #{linear_model_forward.1} parent=1 // pred_fallthru
      _
    // Predicated region
    $region26: #{linear_model_forward.1} parent=1 // pred_check
      _
    $region27: #{linear_model_forward.1} parent=1 // pred_check_branch
      %903 = sbr.rel (0) target = $region29
    $region28: #{linear_model_forward.1} parent=1 // pred_region
      _
    $region29: #{linear_model_forward.1} parent=1 // pred_fallthru
      _
    %904 = vsyncpa [#allocation3], 1

</llo_original>
